<compile_context>
chip_gen: v5e
topology: v5e:2x2
jax: 0.10.0
libtpu: 0.0.40
codegen_flags: <defaults>
</compile_context>

<pallas_src>
import functools

import jax
import jax.numpy as jnp
from jax.experimental import pallas as pl
from jax.experimental.pallas import tpu as pltpu

LANE = 128
SUBLANE = 8
DEFAULT_ROW_TILE = 2048  # rows per block; (2048,128) f32 = 1 MiB per input buffer


def _round_up(x, m):
    return ((x + m - 1) // m) * m


def _l1_partial_kernel(a_ref, b_ref, o_ref, *, rows, tile, needs_mask):
    """Per-block partial sum of |a - b|, reduced to a lane-dense (8,128) f32 slab.

    The row-axis reduction is done via reshape (tile//8, 8, 128) + sum over axis 0,
    which lowers to pure VPU vreg adds (no XLU cross-lane work in the inner loop).
    """
    diff = jnp.abs(a_ref[...].astype(jnp.float32) - b_ref[...].astype(jnp.float32))
    if needs_mask:
        # Mask rows of the ragged last block that fall past the real array extent
        # (their VMEM contents are unspecified).  `rows` is a trace-time constant.
        row = jax.lax.broadcasted_iota(jnp.int32, (tile, LANE), 0)
        valid = (pl.program_id(0) * tile + row) < rows
        diff = jnp.where(valid, diff, jnp.float32(0.0))
    partial = jnp.sum(diff.reshape(tile // SUBLANE, SUBLANE, LANE), axis=0)
    o_ref[...] = partial[None]


def l1_mean_pallas(a, b, *, row_tile=DEFAULT_ROW_TILE):
    """nn.L1Loss() equivalent: mean(|a - b|) over all elements (float32 scalar)."""
    assert a.shape == b.shape, (a.shape, b.shape)
    n = a.size

    # Minimum sublane granularity for the input dtype (f32: 8, bf16/f16: 16, int8: 32).
    itemsize = jnp.dtype(a.dtype).itemsize
    sub = {4: 8, 2: 16, 1: 32}.get(itemsize, SUBLANE)

    # Tiny inputs: not worth a kernel launch (and would need a block taller than the
    # array).  Plain jnp is exact and cheap here.
    if n < sub * LANE:
        return jnp.mean(jnp.abs(a.astype(jnp.float32) - b.astype(jnp.float32)))

    a_flat = a.reshape(-1)
    b_flat = b.reshape(-1)
    if n % LANE != 0:
        # Rare ragged-tail fallback: pad with zeros (contribute 0 to |a-b|) only up to
        # the next lane boundary so the (rows, 128) reshape is exact.  The common VGG
        # feature-map sizes are multiples of 128, so this branch is normally skipped
        # (no extra HBM copy).
        pad = _round_up(n, LANE) - n
        a_flat = jnp.pad(a_flat, (0, pad))
        b_flat = jnp.pad(b_flat, (0, pad))

    rows = a_flat.size // LANE
    a2 = a_flat.reshape(rows, LANE)
    b2 = b_flat.reshape(rows, LANE)

    # Block row count: as large as requested, floored to the dtype's sublane multiple
    # and never taller than the array (only the LAST block may be ragged).
    tile = max(sub, (min(row_tile, rows) // sub) * sub)
    nblocks = pl.cdiv(rows, tile)
    needs_mask = (rows % tile) != 0

    kernel = functools.partial(
        _l1_partial_kernel, rows=rows, tile=tile, needs_mask=needs_mask)

    partials = pl.pallas_call(
        kernel,
        out_shape=jax.ShapeDtypeStruct((nblocks, SUBLANE, LANE), jnp.float32),
        grid_spec=pltpu.PrefetchScalarGridSpec(
            num_scalar_prefetch=0,
            grid=(nblocks,),
            in_specs=[
                pl.BlockSpec((tile, LANE), lambda i: (i, 0)),
                pl.BlockSpec((tile, LANE), lambda i: (i, 0)),
            ],
            out_specs=pl.BlockSpec((1, SUBLANE, LANE), lambda i: (i, 0, 0)),
        ),
        # Independent per-block partial sums -> grid axis is parallel; on v7x Mosaic
        # can shard it across both TensorCores (harmless on single-TC v5e/v6e).
        compiler_params=pltpu.CompilerParams(
            dimension_semantics=("parallel",)),
    )(a2, b2)

    # Single final cross-lane reduction (outside the kernel), then normalize by the
    # TRUE element count (padded zeros contribute nothing to the sum).
    return jnp.sum(partials) / jnp.float32(n)


class VGGLossPallas:
    """JAX/Pallas equivalent of the PyTorch VGGLoss module."""

    def vgg_loss(self, output_feature, target_feature):
        return (l1_mean_pallas(output_feature[1], target_feature[1])
                + l1_mean_pallas(output_feature[2], target_feature[2])
                + l1_mean_pallas(output_feature[3], target_feature[3]))

    def __call__(self, data_input, model_output):
        targets = data_input['targets']
        output_features = model_output['vgg_outputs']
        target_features = model_output['vgg_targets']
        num_frames = targets.shape[1]
        # Launch fusion: per VGG level, stack the T frames (identical shapes) and run
        # ONE Pallas reduction over the stacked tensor.  Since every frame has the
        # same element count, mean-over-frames of per-frame means equals the mean over
        # the stacked tensor, so the semantics match the PyTorch module exactly while
        # paying 3 kernel launches instead of 3*T.
        loss = jnp.float32(0.0)
        for lvl in (1, 2, 3):
            out_l = jnp.stack([output_features[t][lvl] for t in range(num_frames)])
            tgt_l = jnp.stack([target_features[t][lvl] for t in range(num_frames)])
            loss = loss + l1_mean_pallas(out_l, tgt_l)
        return loss


def _reference(data_input, model_output):
    """Pure-jnp reference (mirrors the PyTorch forward) for correctness checking."""
    targets = data_input['targets']
    num_frames = targets.shape[1]
    losses = []
    for t in range(num_frames):
        of, tf = model_output['vgg_outputs'][t], model_output['vgg_targets'][t]
        l = 0.0
        for lvl in (1, 2, 3):
            l = l + jnp.mean(jnp.abs(of[lvl].astype(jnp.float32)
                                     - tf[lvl].astype(jnp.float32)))
        losses.append(l)
    return jnp.mean(jnp.stack(losses))


if __name__ == "__main__":
    key = jax.random.PRNGKey(0)
    B, T = 2, 3
    # data_input['targets'] is only used for its frame dimension (size(1)).
    key, k = jax.random.split(key)
    targets = jax.random.normal(k, (B, T, 3, 16, 16), dtype=jnp.float32)

    # Synthetic multi-scale "VGG" feature pyramids per frame (levels 0..3, only 1..3 used).
    level_shapes = [(B, 4, 32, 32), (B, 8, 16, 16), (B, 16, 8, 8), (B, 32, 4, 4)]

    def make_pyramid(key):
        feats = []
        for shp in level_shapes:
            key, k = jax.random.split(key)
            feats.append(jax.random.normal(k, shp, dtype=jnp.float32))
        return key, feats

    vgg_outputs, vgg_targets = [], []
    for _ in range(T):
        key, fo = make_pyramid(key)
        key, ft = make_pyramid(key)
        vgg_outputs.append(fo)
        vgg_targets.append(ft)

    data_input = {'targets': targets}
    model_output = {'vgg_outputs': vgg_outputs, 'vgg_targets': vgg_targets}

    loss_fn = VGGLossPallas()
    loss = jax.block_until_ready(loss_fn(data_input, model_output))
    ref = jax.block_until_ready(_reference(data_input, model_output))
    assert jnp.allclose(loss, ref, rtol=1e-5, atol=1e-5), (loss, ref)

    # Extra coverage 1: ragged size not a multiple of 128 (tiny-input fallback path).
    key, k1, k2 = jax.random.split(key, 3)
    xa = jax.random.normal(k1, (2, 3, 7, 5), dtype=jnp.float32)
    xb = jax.random.normal(k2, (2, 3, 7, 5), dtype=jnp.float32)
    got = jax.block_until_ready(l1_mean_pallas(xa, xb))
    want = jnp.mean(jnp.abs(xa - xb))
    assert jnp.allclose(got, want, rtol=1e-5, atol=1e-5), (got, want)

    # Extra coverage 2: multi-block grid with a masked ragged last tile (f32).
    key, k1, k2 = jax.random.split(key, 3)
    ya = jax.random.normal(k1, (200, 128), dtype=jnp.float32)
    yb = jax.random.normal(k2, (200, 128), dtype=jnp.float32)
    got = jax.block_until_ready(l1_mean_pallas(ya, yb, row_tile=64))
    want = jnp.mean(jnp.abs(ya - yb))
    assert jnp.allclose(got, want, rtol=1e-4, atol=1e-5), (got, want)

    # Extra coverage 3: bf16 passthrough (native dtype on the wire, f32 math inside).
    key, k1, k2 = jax.random.split(key, 3)
    za = jax.random.normal(k1, (256, 128), dtype=jnp.bfloat16)
    zb = jax.random.normal(k2, (256, 128), dtype=jnp.bfloat16)
    got = jax.block_until_ready(l1_mean_pallas(za, zb, row_tile=64))
    want = jnp.mean(jnp.abs(za.astype(jnp.float32) - zb.astype(jnp.float32)))
    assert jnp.allclose(got, want, rtol=1e-4, atol=1e-5), (got, want)

    print("KERNEL_OK")
</pallas_src>

<mosaic_0001>
module attributes {stable_mosaic.version = 11 : i64} {
  func.func @_l1_partial_kernel(%arg0: i32, %arg1: memref<96x128xf32, #tpu.memory_space<vmem>>, %arg2: memref<96x128xf32, #tpu.memory_space<vmem>>, %arg3: memref<1x8x128xf32, #tpu.memory_space<vmem>>) attributes {dimension_semantics = [#tpu.dimension_semantics<parallel>], iteration_bounds = array<i64: 1>, scalar_prefetch = 0 : i64, scratch_operands = 0 : i64, tpu.core_type = #tpu.core_type<tc>, window_params = [{transform_indices = @transform_0, window_bounds = array<i64: 96, 128>}, {transform_indices = @transform_1, window_bounds = array<i64: 96, 128>}, {transform_indices = @transform_2, window_bounds = array<i64: 1, 8, 128>}]} {
    %c0 = arith.constant 0 : index
    %c0_0 = arith.constant 0 : index
    %0 = vector.load %arg1[%c0, %c0_0] : memref<96x128xf32, #tpu.memory_space<vmem>>, vector<96x128xf32>
    %c0_1 = arith.constant 0 : index
    %c0_2 = arith.constant 0 : index
    %1 = vector.load %arg2[%c0_1, %c0_2] : memref<96x128xf32, #tpu.memory_space<vmem>>, vector<96x128xf32>
    %2 = arith.subf %0, %1 : vector<96x128xf32>
    %3 = math.absf %2 : vector<96x128xf32>
    %4 = vector.shape_cast %3 : vector<96x128xf32> to vector<12x8x128xf32>
    %cst = arith.constant dense<0.000000e+00> : vector<8x128xf32>
    %5 = vector.multi_reduction <add>, %4, %cst [0] : vector<12x8x128xf32> to vector<8x128xf32>
    %6 = vector.shape_cast %5 : vector<8x128xf32> to vector<1x8x128xf32>
    %c0_3 = arith.constant 0 : index
    %c0_4 = arith.constant 0 : index
    %c0_5 = arith.constant 0 : index
    %7 = vector.load %arg3[%c0_3, %c0_4, %c0_5] : memref<1x8x128xf32, #tpu.memory_space<vmem>>, vector<1x8x128xf32>
    tpu.vector_store %arg3[%c0_3, %c0_4, %c0_5], %6 {strides = array<i32>} : memref<1x8x128xf32, #tpu.memory_space<vmem>>, vector<1x8x128xf32>,
    return
  }
  func.func @transform_0(%arg0: i32) -> (i32, i32) {
    %c0_i32 = arith.constant 0 : i32
    %c0_i32_0 = arith.constant 0 : i32
    return %arg0, %c0_i32 : i32, i32
  }
  func.func @transform_1(%arg0: i32) -> (i32, i32) {
    %c0_i32 = arith.constant 0 : i32
    %c0_i32_0 = arith.constant 0 : i32
    return %arg0, %c0_i32 : i32, i32
  }
  func.func @transform_2(%arg0: i32) -> (i32, i32, i32) {
    %c0_i32 = arith.constant 0 : i32
    %c0_i32_0 = arith.constant 0 : i32
    %c0_i32_1 = arith.constant 0 : i32
    return %arg0, %c0_i32, %c0_i32_0 : i32, i32, i32
  }
}

</mosaic_0001>

<llo_original>
// kernel: tpu_custom_call.1
$region0: #{tpu_custom_call.1}
  #allocation0 [shape = 'u32[]', space=smem, size = 0x4, offset = 0x4, fixed_abs, tag = 'smem constant byte address 0x4 - core index']
  #allocation1 [shape = 'u32[72,128]{1,0:T(1,128)}', space=vmem, size = 0x9000, scoped, tag = 'internal scratch']
  %s0 = inlined_call_operand.hbm [shape: f32[96,128], index: 0, kind: input, shape index: {}]
  %s1 = inlined_call_operand.hbm [shape: f32[96,128], index: 1, kind: input, shape index: {}]
  %s2 = inlined_call_operand.hbm [shape: f32[1,8,128], index: 2, kind: output, shape index: {}]
  %s3 = sld [smem:[#allocation0]]
  $region26: #{tpu_custom_call.1} parent=0
    _
  %s5 = ssub.s32 1, %s3
  %s6 = scalar_select 0, %s5, %s3
  $region1: #{tpu_custom_call.1} parent=0
    #allocation2 [shape = 'u8[49152]{0}', space=vmem, size = 0xc000, scoped, tag = 'input window, operand 0, single buffered']
    #allocation3 [shape = 's32[1]{0}', space=sflag, size = 0x4, scoped, tag = 'scoped memory for tpu_custom_call.1']
    #allocation4 [shape = 's32[1]{0}', space=sflag, size = 0x4, scoped, tag = 'scoped memory for tpu_custom_call.1']
    #allocation5 [shape = 'u8[49152]{0}', space=vmem, size = 0xc000, scoped, tag = 'input window, operand 1, single buffered']
    #allocation6 [shape = 's32[1]{0}', space=sflag, size = 0x4, scoped, tag = 'scoped memory for tpu_custom_call.1']
    #allocation7 [shape = 'u8[4096]{0}', space=vmem, size = 0x1000, scoped, tag = 'output window, operand 0, single buffered']
    %7 = vsyncpa [#allocation3], 0
    %8 = vsyncpa [#allocation6], 0
    %9 = vsyncpa [#allocation4], 0
    // Predicated region
    $region2: #{tpu_custom_call.1} parent=1 // pred_check
      _
    $region3: #{tpu_custom_call.1} parent=1 // pred_check_branch
      %11 = sbr.rel (0) target = $region5
    $region4: #{tpu_custom_call.1} parent=1 // pred_region
      %13 = vsyncadd [#allocation3], 0
      %s14 = sshll.u32 %s0, 4
      %s15 = int_to_ptr.hbm [resolvable:$true] %s14
      %s16 = sshll.u32 [#allocation2], 4
      %s17 = int_to_ptr.vmem [resolvable:$true] %s16
      %22 = dma.hbm_to_vmem [thread:$0]  %s15, 1536, %s17, [#allocation3], 128, 128, 8
    $region5: #{tpu_custom_call.1} parent=1 // pred_fallthru
      _
    // Predicated region
    $region6: #{tpu_custom_call.1} parent=1 // pred_check
      _
    $region7: #{tpu_custom_call.1} parent=1 // pred_check_branch
      %24 = sbr.rel (0) target = $region9
    $region8: #{tpu_custom_call.1} parent=1 // pred_region
      %26 = vsyncadd [#allocation6], 0
      %s27 = sshll.u32 %s1, 4
      %s28 = int_to_ptr.hbm [resolvable:$true] %s27
      %s29 = sshll.u32 [#allocation5], 4
      %s30 = int_to_ptr.vmem [resolvable:$true] %s29
      %35 = dma.hbm_to_vmem [thread:$0]  %s28, 1536, %s30, [#allocation6], 128, 128, 8
    $region9: #{tpu_custom_call.1} parent=1 // pred_fallthru
      _
    // Predicated region
    $region10: #{tpu_custom_call.1} parent=1 // pred_check
      _
    $region11: #{tpu_custom_call.1} parent=1 // pred_check_branch
      %37 = sbr.rel (0) target = $region13
    $region12: #{tpu_custom_call.1} parent=1 // pred_region
      %39 = dma.done [#allocation3], 1536
    $region13: #{tpu_custom_call.1} parent=1 // pred_fallthru
      _
    // Predicated region
    $region14: #{tpu_custom_call.1} parent=1 // pred_check
      _
    $region15: #{tpu_custom_call.1} parent=1 // pred_check_branch
      %41 = sbr.rel (0) target = $region17
    $region16: #{tpu_custom_call.1} parent=1 // pred_region
      %43 = dma.done [#allocation6], 1536
    $region17: #{tpu_custom_call.1} parent=1 // pred_fallthru
      _
    %v44 = vld [vmem:[#allocation2] sm:$0xff]
    %v45 = vld [vmem:[#allocation2 + $0x8] sm:$0xff]
    %v46 = vld [vmem:[#allocation2 + $0x10] sm:$0xff]
    %v47 = vld [vmem:[#allocation2 + $0x18] sm:$0xff]
    %v48 = vld [vmem:[#allocation2 + $0x20] sm:$0xff]
    %v49 = vld [vmem:[#allocation2 + $0x28] sm:$0xff]
    %v50 = vld [vmem:[#allocation2 + $0x30] sm:$0xff]
    %v51 = vld [vmem:[#allocation2 + $0x38] sm:$0xff]
    %v52 = vld [vmem:[#allocation2 + $0x40] sm:$0xff]
    %v53 = vld [vmem:[#allocation2 + $0x48] sm:$0xff]
    %v54 = vld [vmem:[#allocation2 + $0x50] sm:$0xff]
    %v55 = vld [vmem:[#allocation2 + $0x58] sm:$0xff]
    %v56 = vld [vmem:[#allocation5] sm:$0xff]
    %v57 = vld [vmem:[#allocation5 + $0x8] sm:$0xff]
    %v58 = vld [vmem:[#allocation5 + $0x10] sm:$0xff]
    %v59 = vld [vmem:[#allocation5 + $0x18] sm:$0xff]
    %v60 = vld [vmem:[#allocation5 + $0x20] sm:$0xff]
    %v61 = vld [vmem:[#allocation5 + $0x28] sm:$0xff]
    %v62 = vld [vmem:[#allocation5 + $0x30] sm:$0xff]
    %v63 = vld [vmem:[#allocation5 + $0x38] sm:$0xff]
    %v64 = vld [vmem:[#allocation5 + $0x40] sm:$0xff]
    %v65 = vld [vmem:[#allocation5 + $0x48] sm:$0xff]
    %v66 = vld [vmem:[#allocation5 + $0x50] sm:$0xff]
    %v67 = vld [vmem:[#allocation5 + $0x58] sm:$0xff]
    %v68 = vsub.f32 %v44, %v56
    %v69 = vsub.f32 %v45, %v57
    %v70 = vsub.f32 %v46, %v58
    %v71 = vsub.f32 %v47, %v59
    %v72 = vsub.f32 %v48, %v60
    %v73 = vsub.f32 %v49, %v61
    %v74 = vsub.f32 %v50, %v62
    %v75 = vsub.f32 %v51, %v63
    %v76 = vsub.f32 %v52, %v64
    %v77 = vsub.f32 %v53, %v65
    %v78 = vsub.f32 %v54, %v66
    %v79 = vsub.f32 %v55, %v67
    %v80 = vand.u32 2147483647, %v68
    %v81 = vand.u32 2147483647, %v69
    %v82 = vand.u32 2147483647, %v70
    %v83 = vand.u32 2147483647, %v71
    %v84 = vand.u32 2147483647, %v72
    %v85 = vand.u32 2147483647, %v73
    %v86 = vand.u32 2147483647, %v74
    %v87 = vand.u32 2147483647, %v75
    %v88 = vand.u32 2147483647, %v76
    %v89 = vand.u32 2147483647, %v77
    %v90 = vand.u32 2147483647, %v78
    %v91 = vand.u32 2147483647, %v79
    %v92 = vadd.f32 %v80, %v81
    %v93 = vadd.f32 %v92, %v82
    %v94 = vadd.f32 %v93, %v83
    %v95 = vadd.f32 %v94, %v84
    %v96 = vadd.f32 %v95, %v85
    %v97 = vadd.f32 %v96, %v86
    %v98 = vadd.f32 %v97, %v87
    %v99 = vadd.f32 %v98, %v88
    %v100 = vadd.f32 %v99, %v89
    %v101 = vadd.f32 %v100, %v90
    %v102 = vadd.f32 %v101, %v91
    %103 = vst [vmem:[#allocation7] sm:$0xff] %v102
    // Predicated region
    $region18: #{tpu_custom_call.1} parent=1 // pred_check
      _
    $region19: #{tpu_custom_call.1} parent=1 // pred_check_branch
      %105 = sbr.rel (0) target = $region21
    $region20: #{tpu_custom_call.1} parent=1 // pred_region
      %107 = vsyncadd [#allocation4], 0
      %s109 = sshll.u32 [#allocation7], 4
      %s110 = int_to_ptr.vmem [resolvable:$true] %s109
      %s111 = sshll.u32 %s2, 4
      %s112 = int_to_ptr.hbm [resolvable:$true] %s111
      %114 = dma.vmem_to_hbm [thread:$0]  %s110, 128, %s112, [#allocation4]
    $region21: #{tpu_custom_call.1} parent=1 // pred_fallthru
      _
    // Predicated region
    $region22: #{tpu_custom_call.1} parent=1 // pred_check
      _
    $region23: #{tpu_custom_call.1} parent=1 // pred_check_branch
      %116 = sbr.rel (0) target = $region25
    $region24: #{tpu_custom_call.1} parent=1 // pred_region
      %118 = dma.done [#allocation4], 128
    $region25: #{tpu_custom_call.1} parent=1 // pred_fallthru
      _
    %119 = vsyncpa [#allocation3], 1
    %120 = vsyncpa [#allocation6], 1
    %121 = vsyncpa [#allocation4], 1

</llo_original>
